<compile_context>
chip_gen: v5e
topology: v5e:2x2
jax: 0.10.0
libtpu: 0.0.40
codegen_flags: <defaults>
</compile_context>

<pallas_src>
import jax
import jax.numpy as jnp
from jax.experimental import pallas as pl
from jax.experimental.pallas import tpu as pltpu


def _linear_attention_kernel(x_ref, w_ref, b_ref, o_ref):
    # x_ref: (1, N, D)          input tokens for batch b
    # w_ref: (1, D, 3*Dh)       per-head QKV weight slab [Wq | Wk | Wv]
    # b_ref: (1, 1, 3*Dh)       per-head QKV bias        [bq | bk | bv]
    # o_ref: (1, 1, N, Dh)      per-(batch, head) output
    dh = o_ref.shape[-1]

    x = x_ref[0].astype(jnp.float32)                     # (N, D)
    w = w_ref[0].astype(jnp.float32)                     # (D, 3*Dh)
    bias = b_ref[0].astype(jnp.float32)                  # (1, 3*Dh)

    # Single lane-dense projection for q, k, v of this head (f32 accumulate).
    qkv = jnp.dot(x, w, preferred_element_type=jnp.float32) + bias   # (N, 3*Dh)
    q = qkv[:, 0:dh]                                      # (N, Dh)
    k = qkv[:, dh:2 * dh]                                 # (N, Dh)
    v = qkv[:, 2 * dh:3 * dh]                             # (N, Dh)

    # k: softmax over the sequence axis (dim=-2 in the PyTorch module).
    k = k - jnp.max(k, axis=0, keepdims=True)
    k = jnp.exp(k)
    k = k / jnp.sum(k, axis=0, keepdims=True)

    # q: softmax over the feature axis (dim=-1).
    q = q - jnp.max(q, axis=1, keepdims=True)
    q = jnp.exp(q)
    q = q / jnp.sum(q, axis=1, keepdims=True)

    # kv[d, e] = sum_n k[n, d] * v[n, e]   ('b h n d, b h n e -> b h d e')
    kv = jax.lax.dot_general(
        k, v, (((0,), (0,)), ((), ())), preferred_element_type=jnp.float32
    )                                                     # (Dh, Dh)

    # out[n, e] = sum_d q[n, d] * kv[d, e] ('b h d e, b h n d -> b h n e')
    out = jnp.dot(q, kv, preferred_element_type=jnp.float32)          # (N, Dh)

    o_ref[0, 0] = out.astype(o_ref.dtype)


def linear_attention(x, w_qkv, b_qkv, *, heads):
    """LinearAttention.forward(x) with mask=None.

    x:      (B, N, D) or (B, N, D, 1)   (degree-m singleton handled)
    w_qkv:  (D, 3*heads*dim_head)       (acts as x @ w_qkv + b_qkv)
    b_qkv:  (3*heads*dim_head,)
    returns (B, N, heads*dim_head) [+ trailing 1 if input had it]
    """
    has_degree_m_dim = x.ndim == 4
    if has_degree_m_dim:
        x = x[..., 0]

    B, N, D = x.shape
    three_hd = w_qkv.shape[1]
    assert three_hd % (3 * heads) == 0
    dim_head = three_hd // (3 * heads)

    # Re-layout the weight/bias so each head gets a contiguous [q|k|v] slab:
    # (D, 3*H*Dh) -> (H, D, 3*Dh);  (3*H*Dh,) -> (H, 1, 3*Dh).
    w = (
        w_qkv.reshape(D, 3, heads, dim_head)
        .transpose(2, 0, 1, 3)
        .reshape(heads, D, 3 * dim_head)
    )
    b = (
        b_qkv.reshape(3, heads, dim_head)
        .transpose(1, 0, 2)
        .reshape(heads, 1, 3 * dim_head)
    )

    out = pl.pallas_call(
        _linear_attention_kernel,
        out_shape=jax.ShapeDtypeStruct((B, heads, N, dim_head), x.dtype),
        grid_spec=pltpu.PrefetchScalarGridSpec(
            num_scalar_prefetch=0,
            # batch varies fastest -> per-head W / bias blocks stay resident.
            grid=(heads, B),
            in_specs=[
                pl.BlockSpec((1, N, D), lambda h, b: (b, 0, 0)),
                pl.BlockSpec((1, D, 3 * dim_head), lambda h, b: (h, 0, 0)),
                pl.BlockSpec((1, 1, 3 * dim_head), lambda h, b: (h, 0, 0)),
            ],
            out_specs=pl.BlockSpec(
                (1, 1, N, dim_head), lambda h, b: (b, h, 0, 0)
            ),
        ),
        compiler_params=pltpu.CompilerParams(
            dimension_semantics=("parallel", "parallel"),
        ),
    )(x, w, b)

    # (B, H, N, Dh) -> (B, N, H*Dh)
    out = out.transpose(0, 2, 1, 3).reshape(B, N, heads * dim_head)
    if has_degree_m_dim:
        out = out[..., None]
    return out


def linear_attention_ref(x, w_qkv, b_qkv, heads):
    """Plain-JAX reference mirroring the PyTorch module (mask=None)."""
    squeeze = x.ndim == 4
    if squeeze:
        x = x[..., 0]
    B, N, D = x.shape
    qkv = jnp.einsum("bnd,de->bne", x, w_qkv) + b_qkv
    q, k, v = jnp.split(qkv, 3, axis=-1)

    def split_heads(t):
        return t.reshape(B, N, heads, -1).transpose(0, 2, 1, 3)  # (B,H,N,Dh)

    q, k, v = map(split_heads, (q, k, v))
    k = jax.nn.softmax(k, axis=-2)
    q = jax.nn.softmax(q, axis=-1)
    kv = jnp.einsum("bhnd,bhne->bhde", k, v)
    out = jnp.einsum("bhde,bhnd->bhne", kv, q)
    out = out.transpose(0, 2, 1, 3).reshape(B, N, -1)
    if squeeze:
        out = out[..., None]
    return out


if __name__ == "__main__":
    # Small shapes consistent with the module: batch=2, seq=8, hidden=32.
    # heads=2, dim_head=128 -> lane-dense (128) head dimension on TPU.
    B, N, dim = 2, 8, 32
    heads, dim_head = 2, 128

    key = jax.random.PRNGKey(0)
    kx, kw, kb = jax.random.split(key, 3)

    x = jax.random.normal(kx, (B, N, dim), dtype=jnp.float32)
    # Deterministic synthetic parameters (no checkpoint load).
    w_qkv = jax.random.normal(
        kw, (dim, 3 * heads * dim_head), dtype=jnp.float32
    ) / jnp.sqrt(dim)
    b_qkv = jax.random.normal(kb, (3 * heads * dim_head,), dtype=jnp.float32) * 0.01

    out = linear_attention(x, w_qkv, b_qkv, heads=heads)
    out = jax.block_until_ready(out)

    ref = linear_attention_ref(x, w_qkv, b_qkv, heads)
    assert out.shape == ref.shape, (out.shape, ref.shape)
    assert jnp.allclose(out, ref, atol=1e-4, rtol=1e-4), "mismatch vs reference"

    print("KERNEL_OK")
</pallas_src>

<mosaic_0001>
module attributes {stable_mosaic.version = 11 : i64} {
  func.func @_linear_attention_kernel(%arg0: i32, %arg1: i32, %arg2: memref<1x8x32xf32, #tpu.memory_space<vmem>>, %arg3: memref<1x32x384xf32, #tpu.memory_space<vmem>>, %arg4: memref<1x1x384xf32, #tpu.memory_space<vmem>>, %arg5: memref<1x1x8x128xf32, #tpu.memory_space<vmem>>) attributes {dimension_semantics = [#tpu.dimension_semantics<parallel>, #tpu.dimension_semantics<parallel>], iteration_bounds = array<i64: 2, 2>, scalar_prefetch = 0 : i64, scratch_operands = 0 : i64, tpu.core_type = #tpu.core_type<tc>, window_params = [{transform_indices = @transform_0, window_bounds = array<i64: 1, 8, 32>}, {transform_indices = @transform_1, window_bounds = array<i64: 1, 32, 384>}, {transform_indices = @transform_2, window_bounds = array<i64: 1, 1, 384>}, {transform_indices = @transform_3, window_bounds = array<i64: 1, 1, 8, 128>}]} {
    %c0 = arith.constant 0 : index
    %c0_0 = arith.constant 0 : index
    %c0_1 = arith.constant 0 : index
    %0 = vector.load %arg2[%c0, %c0_0, %c0_1] : memref<1x8x32xf32, #tpu.memory_space<vmem>>, vector<1x8x32xf32>
    %1 = vector.shape_cast %0 : vector<1x8x32xf32> to vector<8x32xf32>
    %c0_2 = arith.constant 0 : index
    %c0_3 = arith.constant 0 : index
    %c0_4 = arith.constant 0 : index
    %2 = vector.load %arg3[%c0_2, %c0_3, %c0_4] : memref<1x32x384xf32, #tpu.memory_space<vmem>>, vector<1x32x384xf32>
    %3 = vector.shape_cast %2 : vector<1x32x384xf32> to vector<32x384xf32>
    %c0_5 = arith.constant 0 : index
    %c0_6 = arith.constant 0 : index
    %c0_7 = arith.constant 0 : index
    %4 = vector.load %arg4[%c0_5, %c0_6, %c0_7] : memref<1x1x384xf32, #tpu.memory_space<vmem>>, vector<1x1x384xf32>
    %5 = vector.shape_cast %4 : vector<1x1x384xf32> to vector<1x384xf32>
    %cst = arith.constant dense<0.000000e+00> : vector<8x384xf32>
    %6 = tpu.matmul %1, %3, %cst {dimension_numbers = #tpu.dot_dimension_numbers<[1], [0], [0], [1], [0, 0, 1, 1], [], []>} : vector<8x32xf32>, vector<32x384xf32>, vector<8x384xf32> -> vector<8x384xf32>
    %7 = vector.broadcast %5 : vector<1x384xf32> to vector<8x384xf32>
    %8 = arith.addf %6, %7 : vector<8x384xf32>
    %9 = vector.extract_strided_slice %8 {offsets = [0, 0], sizes = [8, 128], strides = [1, 1]} : vector<8x384xf32> to vector<8x128xf32>
    %10 = vector.extract_strided_slice %8 {offsets = [0, 128], sizes = [8, 128], strides = [1, 1]} : vector<8x384xf32> to vector<8x128xf32>
    %11 = vector.extract_strided_slice %8 {offsets = [0, 256], sizes = [8, 128], strides = [1, 1]} : vector<8x384xf32> to vector<8x128xf32>
    %cst_8 = arith.constant dense<0xFF800000> : vector<128xf32>
    %12 = vector.multi_reduction <maximumf>, %10, %cst_8 [0] : vector<8x128xf32> to vector<128xf32>
    %13 = vector.shape_cast %12 : vector<128xf32> to vector<1x128xf32>
    %14 = vector.broadcast %13 : vector<1x128xf32> to vector<8x128xf32>
    %15 = arith.subf %10, %14 : vector<8x128xf32>
    %16 = math.exp %15 : vector<8x128xf32>
    %cst_9 = arith.constant dense<0.000000e+00> : vector<128xf32>
    %17 = vector.multi_reduction <add>, %16, %cst_9 [0] : vector<8x128xf32> to vector<128xf32>
    %18 = vector.shape_cast %17 : vector<128xf32> to vector<1x128xf32>
    %19 = vector.broadcast %18 : vector<1x128xf32> to vector<8x128xf32>
    %20 = arith.divf %16, %19 : vector<8x128xf32>
    %cst_10 = arith.constant dense<0xFF800000> : vector<8xf32>
    %21 = vector.multi_reduction <maximumf>, %9, %cst_10 [1] : vector<8x128xf32> to vector<8xf32>
    %22 = vector.shape_cast %21 : vector<8xf32> to vector<8x1xf32>
    %23 = vector.broadcast %22 : vector<8x1xf32> to vector<8x128xf32>
    %24 = arith.subf %9, %23 : vector<8x128xf32>
    %25 = math.exp %24 : vector<8x128xf32>
    %cst_11 = arith.constant dense<0.000000e+00> : vector<8xf32>
    %26 = vector.multi_reduction <add>, %25, %cst_11 [1] : vector<8x128xf32> to vector<8xf32>
    %27 = vector.shape_cast %26 : vector<8xf32> to vector<8x1xf32>
    %28 = vector.broadcast %27 : vector<8x1xf32> to vector<8x128xf32>
    %29 = arith.divf %25, %28 : vector<8x128xf32>
    %cst_12 = arith.constant dense<0.000000e+00> : vector<128x128xf32>
    %30 = tpu.matmul %20, %11, %cst_12 {dimension_numbers = #tpu.dot_dimension_numbers<[0], [0], [1], [1], [0, 1, 1, 1], [], []>} : vector<8x128xf32>, vector<8x128xf32>, vector<128x128xf32> -> vector<128x128xf32>
    %cst_13 = arith.constant dense<0.000000e+00> : vector<8x128xf32>
    %31 = tpu.matmul %29, %30, %cst_13 {dimension_numbers = #tpu.dot_dimension_numbers<[1], [0], [0], [1], [0, 0, 1, 1], [], []>} : vector<8x128xf32>, vector<128x128xf32>, vector<8x128xf32> -> vector<8x128xf32>
    %c0_14 = arith.constant 0 : index
    %c0_15 = arith.constant 0 : index
    %c0_16 = arith.constant 0 : index
    %c0_17 = arith.constant 0 : index
    %32 = vector.load %arg5[%c0_14, %c0_15, %c0_16, %c0_17] : memref<1x1x8x128xf32, #tpu.memory_space<vmem>>, vector<1x1x8x128xf32>
    %33 = vector.shape_cast %32 : vector<1x1x8x128xf32> to vector<8x128xf32>
    %34 = vector.shape_cast %31 : vector<8x128xf32> to vector<1x1x8x128xf32>
    tpu.vector_store %arg5[%c0_14, %c0_15, %c0_16, %c0_17], %34 {strides = array<i32>} : memref<1x1x8x128xf32, #tpu.memory_space<vmem>>, vector<1x1x8x128xf32>,
    return
  }
  func.func @transform_0(%arg0: i32, %arg1: i32) -> (i32, i32, i32) {
    %c0_i32 = arith.constant 0 : i32
    %c0_i32_0 = arith.constant 0 : i32
    %c0_i32_1 = arith.constant 0 : i32
    return %arg1, %c0_i32, %c0_i32_0 : i32, i32, i32
  }
  func.func @transform_1(%arg0: i32, %arg1: i32) -> (i32, i32, i32) {
    %c0_i32 = arith.constant 0 : i32
    %c0_i32_0 = arith.constant 0 : i32
    %c0_i32_1 = arith.constant 0 : i32
    return %arg0, %c0_i32, %c0_i32_0 : i32, i32, i32
  }
  func.func @transform_2(%arg0: i32, %arg1: i32) -> (i32, i32, i32) {
    %c0_i32 = arith.constant 0 : i32
    %c0_i32_0 = arith.constant 0 : i32
    %c0_i32_1 = arith.constant 0 : i32
    return %arg0, %c0_i32, %c0_i32_0 : i32, i32, i32
  }
  func.func @transform_3(%arg0: i32, %arg1: i32) -> (i32, i32, i32, i32) {
    %c0_i32 = arith.constant 0 : i32
    %c0_i32_0 = arith.constant 0 : i32
    %c0_i32_1 = arith.constant 0 : i32
    return %arg1, %arg0, %c0_i32, %c0_i32_0 : i32, i32, i32, i32
  }
}

</mosaic_0001>

<llo_original>
// kernel: tpu_custom_call.1
$region0: #{tpu_custom_call.1}
  #allocation0 [shape = 'u32[]', space=smem, size = 0x4, offset = 0x4, fixed_abs, tag = 'smem constant byte address 0x4 - core index']
  #allocation1 [shape = 'u32[72,128]{1,0:T(1,128)}', space=vmem, size = 0x9000, scoped, tag = 'internal scratch']
  %s0 = inlined_call_operand.hbm [shape: f32[2,8,32], index: 0, kind: input, shape index: {}]
  %s1 = inlined_call_operand.hbm [shape: f32[2,32,384], index: 1, kind: input, shape index: {}]
  %s2 = inlined_call_operand.hbm [shape: f32[2,1,384], index: 2, kind: input, shape index: {}]
  %s3 = inlined_call_operand.hbm [shape: f32[2,2,8,128], index: 3, kind: output, shape index: {}]
  %s4 = sld [smem:[#allocation0]]
  $region57: #{tpu_custom_call.1} parent=0
    _
  %s6 = ssub.s32 1, %s4
  %s7 = scalar_select 0, %s6, %s4
  $region1: #{tpu_custom_call.1} parent=0
    #allocation2 [shape = 'u8[8192]{0}', space=vmem, size = 0x2000, scoped, tag = 'input window, operand 0']
    #allocation3 [shape = 's32[2]{0}', space=sflag, size = 0x8, scoped, tag = 'scoped memory for tpu_custom_call.1']
    #allocation4 [shape = 's32[2]{0}', space=sflag, size = 0x8, scoped, tag = 'scoped memory for tpu_custom_call.1']
    #allocation5 [shape = 'u8[98304]{0}', space=vmem, size = 0x18000, scoped, tag = 'input window, operand 1']
    #allocation6 [shape = 's32[2]{0}', space=sflag, size = 0x8, scoped, tag = 'scoped memory for tpu_custom_call.1']
    #allocation7 [shape = 'u8[3072]{0}', space=vmem, size = 0xc00, scoped, tag = 'input window, operand 2']
    #allocation8 [shape = 'u8[8192]{0}', space=vmem, size = 0x2000, scoped, tag = 'output window, operand 0']
    %8 = vsyncpa [#allocation3], 0
    %s9 = scalar_lea.sflag [#allocation3], 1
    %10 = vsyncpa %s9, 0
    %11 = vsyncpa [#allocation6], 0
    %s12 = scalar_lea.sflag [#allocation6], 1
    %13 = vsyncpa %s12, 0
    %14 = vsyncpa [#allocation4], 0
    %s15 = scalar_lea.sflag [#allocation4], 1
    %16 = vsyncpa %s15, 0
    loop: start=0, step=1, limit=6
    $region2: #{tpu_custom_call.1} parent=1 // loop_pre_header
      _
    $region3: #{tpu_custom_call.1} parent=1 // loop_header
      %s18 = sphi 0, %s22
      %p19 = scmp.ge.s32.totalorder %s18, 6
      %s25 = sphi 0, %s37
      %s26 = sphi 0, %s33
      %s27 = sphi 0, %s25
      %s28 = sphi 0, %s26
      %s29 = sphi 0, %s27
      %s30 = sphi 0, %s28
      %s40 = sphi 0, %s42
      %s43 = sphi 0, %s40
      %s44 = sphi 0, %s43
      %s60 = sphi 0, %s44
      %s66 = sphi 0, %s68
      %s69 = sphi 0, %s66
      %s70 = sphi 0, %s69
      %s86 = sphi 0, %s70
      %s92 = sphi 0, %s94
      %s95 = sphi 0, %s92
      %s96 = sphi 0, %s95
      %s112 = sphi 0, %s96
      %s120 = sphi 0, %s122
      %s123 = sphi 0, %s120
      %s124 = sphi 0, %s123
      %s140 = sphi 0, %s124
    $region4: #{tpu_custom_call.1} parent=1 // loop_header_branch
      %21 = sbr.rel (%p19) target = $region8
    $region5: #{tpu_custom_call.1} parent=1 // loop_body
      %s23 = ssub.s32 %s18, 1
      %s24 = ssub.s32 %s18, 2
      %s31 = sadd.s32 1, %s26
      %p32 = scmp.ge.s32.totalorder %s31, 2
      %s33 = scalar_select %p32, 0, %s31
      %s34 = sadd.s32 1, %s25
      %s35 = scalar_select %p32, %s34, %s25
      %p36 = scmp.ge.s32.totalorder %s35, 2
      %s37 = scalar_select %p36, 0, %s35
      %s38 = ssub.s32 %s26, %s33
      %p39 = scmp.eq.s32.totalorder %s38, 0
      %s41 = sadd.s32 %s40, 1
      %s42 = scalar_select %p39, %s40, %s41
      %p45 = pneg %p39
      %p46 = scmp.eq.s32.totalorder %s18, 3
      %p47 = por %p45, %p46
      %p48 = scmp.ne.s32.totalorder %s40, %s43
      %p49 = scmp.eq.s32.totalorder %s18, 0
      %p50 = por %p48, %p49
      %p51 = scmp.ne.s32.totalorder %s40, %s43
      %p52 = scmp.eq.s32.totalorder %s23, 3
      %p53 = por %p51, %p52
      %p54 = scmp.ne.s32.totalorder %s43, %s44
      %p55 = scmp.eq.s32.totalorder %s23, 0
      %p56 = por %p54, %p55
      %p57 = scmp.ne.s32.totalorder %s43, %s44
      %p58 = scmp.eq.s32.totalorder %s24, 3
      %p59 = por %p57, %p58
      %p61 = scmp.ne.s32.totalorder %s44, %s60
      %p62 = scmp.eq.s32.totalorder %s24, 0
      %p63 = por %p61, %p62
      %s64 = ssub.s32 %s25, %s37
      %p65 = scmp.eq.s32.totalorder %s64, 0
      %s67 = sadd.s32 %s66, 1
      %s68 = scalar_select %p65, %s66, %s67
      %p71 = pneg %p65
      %p72 = scmp.eq.s32.totalorder %s18, 3
      %p73 = por %p71, %p72
      %p74 = scmp.ne.s32.totalorder %s66, %s69
      %p75 = scmp.eq.s32.totalorder %s18, 0
      %p76 = por %p74, %p75
      %p77 = scmp.ne.s32.totalorder %s66, %s69
      %p78 = scmp.eq.s32.totalorder %s23, 3
      %p79 = por %p77, %p78
      %p80 = scmp.ne.s32.totalorder %s69, %s70
      %p81 = scmp.eq.s32.totalorder %s23, 0
      %p82 = por %p80, %p81
      %p83 = scmp.ne.s32.totalorder %s69, %s70
      %p84 = scmp.eq.s32.totalorder %s24, 3
      %p85 = por %p83, %p84
      %p87 = scmp.ne.s32.totalorder %s70, %s86
      %p88 = scmp.eq.s32.totalorder %s24, 0
      %p89 = por %p87, %p88
      %s90 = ssub.s32 %s25, %s37
      %p91 = scmp.eq.s32.totalorder %s90, 0
      %s93 = sadd.s32 %s92, 1
      %s94 = scalar_select %p91, %s92, %s93
      %p97 = pneg %p91
      %p98 = scmp.eq.s32.totalorder %s18, 3
      %p99 = por %p97, %p98
      %p100 = scmp.ne.s32.totalorder %s92, %s95
      %p101 = scmp.eq.s32.totalorder %s18, 0
      %p102 = por %p100, %p101
      %p103 = scmp.ne.s32.totalorder %s92, %s95
      %p104 = scmp.eq.s32.totalorder %s23, 3
      %p105 = por %p103, %p104
      %p106 = scmp.ne.s32.totalorder %s95, %s96
      %p107 = scmp.eq.s32.totalorder %s23, 0
      %p108 = por %p106, %p107
      %p109 = scmp.ne.s32.totalorder %s95, %s96
      %p110 = scmp.eq.s32.totalorder %s24, 3
      %p111 = por %p109, %p110
      %p113 = scmp.ne.s32.totalorder %s96, %s112
      %p114 = scmp.eq.s32.totalorder %s24, 0
      %p115 = por %p113, %p114
      %s116 = ssub.s32 %s26, %s33
      %s117 = ssub.s32 %s25, %s37
      %s118 = sor.u32 %s116, %s117
      %p119 = scmp.eq.s32.totalorder %s118, 0
      %s121 = sadd.s32 %s120, 1
      %s122 = scalar_select %p119, %s120, %s121
      %p125 = pneg %p119
      %p126 = scmp.eq.s32.totalorder %s18, 3
      %p127 = por %p125, %p126
      %p128 = scmp.ne.s32.totalorder %s120, %s123
      %p129 = scmp.eq.s32.totalorder %s18, 0
      %p130 = por %p128, %p129
      %p131 = scmp.ne.s32.totalorder %s120, %s123
      %p132 = scmp.eq.s32.totalorder %s23, 3
      %p133 = por %p131, %p132
      %p134 = scmp.ne.s32.totalorder %s123, %s124
      %p135 = scmp.eq.s32.totalorder %s23, 0
      %p136 = por %p134, %p135
      %p137 = scmp.ne.s32.totalorder %s123, %s124
      %p138 = scmp.eq.s32.totalorder %s24, 3
      %p139 = por %p137, %p138
      %p141 = scmp.ne.s32.totalorder %s124, %s140
      %p142 = scmp.eq.s32.totalorder %s24, 0
      %p143 = por %p141, %p142
      %p144 = scmp.le.s32.totalorder 1, %s18
      %p145 = scmp.lt.s32.totalorder %s18, 5
      %p146 = pnand %p144, %p145
      %p147 = pneg %p146
      // Predicated region
      $region9: #{tpu_custom_call.1} parent=5 // pred_check
        _
      $region10: #{tpu_custom_call.1} parent=5 // pred_check_branch
        %149 = sbr.rel (%p146) target = $region12
      $region11: #{tpu_custom_call.1} parent=5 // pred_region
        %s150 = ssub.s32 %s18, 1
      $region12: #{tpu_custom_call.1} parent=5 // pred_fallthru
        _
      %p151 = scmp.lt.s32.totalorder %s18, 4
      // Predicated region
      $region13: #{tpu_custom_call.1} parent=5 // pred_check
        %p152 = pneg %p151
      $region14: #{tpu_custom_call.1} parent=5 // pred_check_branch
        %154 = sbr.rel (%p152) target = $region16
      $region15: #{tpu_custom_call.1} parent=5 // pred_region
        // Predicated region
        $region17: #{tpu_custom_call.1} parent=15 // pred_check
          %p155 = pneg %p50
        $region18: #{tpu_custom_call.1} parent=15 // pred_check_branch
          %157 = sbr.rel (%p155) target = $region20
        $region19: #{tpu_custom_call.1} parent=15 // pred_region
          %s158 = sand.u32 %s40, 1
          %s159 = scalar_lea.sflag [#allocation3], %s158
          %s160 = sand.u32 %s40, 1
          %s161 = smul.addr %s160, 8
          %s162 = scalar_lea.vmem [#allocation2], %s161
          %164 = vsyncadd %s159, 0
          %s165 = smul.addr %s26, 8
          %s166 = scalar_lea.hbm %s0, %s165
          %s168 = sshll.u32 %s166, 4
          %s169 = int_to_ptr.hbm [resolvable:$true] %s168
          %s170 = sshll.u32 %s162, 4
          %s171 = int_to_ptr.vmem [resolvable:$true] %s170
          %173 = dma.hbm_to_vmem [thread:$0]  %s169, 128, %s171, %s159
        $region20: #{tpu_custom_call.1} parent=15 // pred_fallthru
          _
        // Predicated region
        $region21: #{tpu_custom_call.1} parent=15 // pred_check
          %p174 = pneg %p76
        $region22: #{tpu_custom_call.1} parent=15 // pred_check_branch
          %176 = sbr.rel (%p174) target = $region24
        $region23: #{tpu_custom_call.1} parent=15 // pred_region
          %s177 = sand.u32 %s18, 1
          %s178 = scalar_lea.sflag [#allocation6], %s177
          %s179 = sand.u32 %s66, 1
          %s180 = smul.addr %s179, 96
          %s181 = scalar_lea.vmem [#allocation5], %s180
          %183 = vsyncadd %s178, 0
          %s184 = smul.addr %s25, 12
          %s185 = smul.addr %s184, 8
          %s186 = scalar_lea.hbm %s1, %s185
          %s187 = sshll.u32 %s186, 4
          %s188 = int_to_ptr.hbm [resolvable:$true] %s187
          %s189 = sshll.u32 %s181, 4
          %s190 = int_to_ptr.vmem [resolvable:$true] %s189
          %195 = dma.hbm_to_vmem [thread:$0]  %s188, 1536, %s190, %s178, 384, 384, 24
        $region24: #{tpu_custom_call.1} parent=15 // pred_fallthru
          _
        // Predicated region
        $region25: #{tpu_custom_call.1} parent=15 // pred_check
          %p196 = pneg %p102
        $region26: #{tpu_custom_call.1} parent=15 // pred_check_branch
          %198 = sbr.rel (%p196) target = $region28
        $region27: #{tpu_custom_call.1} parent=15 // pred_region
          %s199 = sand.u32 %s18, 1
          %s200 = scalar_lea.sflag [#allocation6], %s199
          %s201 = sand.u32 %s92, 1
          %s202 = smul.addr %s201, 3
          %s203 = scalar_lea.vmem [#allocation7], %s202
          %205 = vsyncadd %s200, 0
          %s206 = smul.addr %s25, 3
          %s207 = scalar_lea.hbm %s2, %s206
          %s209 = sshll.u32 %s207, 4
          %s210 = int_to_ptr.hbm [resolvable:$true] %s209
          %s211 = sshll.u32 %s203, 4
          %s212 = int_to_ptr.vmem [resolvable:$true] %s211
          %214 = dma.hbm_to_vmem [thread:$0]  %s210, 48, %s212, %s200
        $region28: #{tpu_custom_call.1} parent=15 // pred_fallthru
          _
      $region16: #{tpu_custom_call.1} parent=5 // pred_fallthru
        _
      %p215 = scmp.le.s32.totalorder 1, %s18
      %p216 = scmp.lt.s32.totalorder %s18, 5
      %p217 = pnand %p215, %p216
      %p218 = pneg %p217
      // Predicated region
      $region29: #{tpu_custom_call.1} parent=5 // pred_check
        _
      $region30: #{tpu_custom_call.1} parent=5 // pred_check_branch
        %220 = sbr.rel (%p217) target = $region32
      $region31: #{tpu_custom_call.1} parent=5 // pred_region
        %s221 = ssub.s32 %s18, 1
        %s222 = sand.u32 %s43, 1
        %s223 = scalar_lea.sflag [#allocation3], %s222
        %s224 = sand.u32 %s43, 1
        %s225 = smul.addr %s224, 8
        %s226 = scalar_lea.vmem [#allocation2], %s225
        // Predicated region
        $region33: #{tpu_custom_call.1} parent=31 // pred_check
          %p227 = pneg %p56
        $region34: #{tpu_custom_call.1} parent=31 // pred_check_branch
          %229 = sbr.rel (%p227) target = $region36
        $region35: #{tpu_custom_call.1} parent=31 // pred_region
          %231 = dma.done %s223, 128
        $region36: #{tpu_custom_call.1} parent=31 // pred_fallthru
          _
        %s232 = sand.u32 %s23, 1
        %s233 = scalar_lea.sflag [#allocation6], %s232
        %s234 = sand.u32 %s69, 1
        %s235 = smul.addr %s234, 96
        %s236 = scalar_lea.vmem [#allocation5], %s235
        // Predicated region
        $region37: #{tpu_custom_call.1} parent=31 // pred_check
          %p237 = pneg %p82
        $region38: #{tpu_custom_call.1} parent=31 // pred_check_branch
          %239 = sbr.rel (%p237) target = $region40
        $region39: #{tpu_custom_call.1} parent=31 // pred_region
          %241 = dma.done %s233, 1536
        $region40: #{tpu_custom_call.1} parent=31 // pred_fallthru
          _
        %s242 = sand.u32 %s23, 1
        %s243 = scalar_lea.sflag [#allocation6], %s242
        %s244 = sand.u32 %s95, 1
        %s245 = smul.addr %s244, 3
        %s246 = scalar_lea.vmem [#allocation7], %s245
        // Predicated region
        $region41: #{tpu_custom_call.1} parent=31 // pred_check
          %p247 = pneg %p108
        $region42: #{tpu_custom_call.1} parent=31 // pred_check_branch
          %249 = sbr.rel (%p247) target = $region44
        $region43: #{tpu_custom_call.1} parent=31 // pred_region
          %251 = dma.done %s243, 48
        $region44: #{tpu_custom_call.1} parent=31 // pred_fallthru
          _
        %s252 = sand.u32 %s43, 1
        %s253 = scalar_lea.sflag [#allocation3], %s252
        %s254 = sand.u32 %s43, 1
        %s255 = smul.addr %s254, 8
        %s256 = scalar_lea.vmem [#allocation2], %s255
        %p257 = pneg %p56
        %p258 = pneg %p53
        %s259 = sand.u32 %s23, 1
        %s260 = scalar_lea.sflag [#allocation6], %s259
        %s261 = sand.u32 %s69, 1
        %s262 = smul.addr %s261, 96
        %s263 = scalar_lea.vmem [#allocation5], %s262
        %p264 = pneg %p82
        %p265 = pneg %p79
        %s266 = sand.u32 %s23, 1
        %s267 = scalar_lea.sflag [#allocation6], %s266
        %s268 = sand.u32 %s95, 1
        %s269 = smul.addr %s268, 3
        %s270 = scalar_lea.vmem [#allocation7], %s269
        %p271 = pneg %p108
        %p272 = pneg %p105
        %p273 = pneg %p136
        %p274 = pneg %p133
        %s275 = sand.u32 %s123, 1
        %s276 = scalar_lea.sflag [#allocation4], %s275
        %s277 = sand.u32 %s123, 1
        %s278 = smul.addr %s277, 8
        %s279 = scalar_lea.vmem [#allocation8], %s278
        %v280 = vld [vmem:[%s226] sm:$0xff]
        %v281 = vld [vmem:[%s236] sm:$0xff]
        %v282 = vld [vmem:[%s236 + $0x8] sm:$0xff]
        %v283 = vld [vmem:[%s236 + $0x10] sm:$0xff]
        %v284 = vld [vmem:[%s236 + $0x18] sm:$0xff]
        %v285 = vld [vmem:[%s236 + $0x20] sm:$0xff]
        %v286 = vld [vmem:[%s236 + $0x28] sm:$0xff]
        %v287 = vld [vmem:[%s236 + $0x30] sm:$0xff]
        %v288 = vld [vmem:[%s236 + $0x38] sm:$0xff]
        %v289 = vld [vmem:[%s236 + $0x40] sm:$0xff]
        %v290 = vld [vmem:[%s236 + $0x48] sm:$0xff]
        %v291 = vld [vmem:[%s236 + $0x50] sm:$0xff]
        %v292 = vld [vmem:[%s236 + $0x58] sm:$0xff]
        %v293 = vld [vmem:[%s246] sm:$0x7]
        %v295 = vperm.slane %v293, 0
        %v296 = vperm.slane %v293, 1
        %v297 = vperm.slane %v293, 2
        %vm301 = vcmask 261120
        %v303 = vsel %vm301, %v280, 0
        %305 = vmatpush.msra.mxu0 0.0
        %306 = vmatpush.msra.mxu0 0.0
        %307 = vmatpush.msra.mxu0 0.0
        %308 = vmatpush.msra.mxu0 0.0
        %309 = vmatpush.msra.mxu0 0.0
        %310 = vmatpush.msra.mxu0 0.0
        %311 = vmatpush.msra.mxu0 0.0
        %312 = vmatpush.msra.mxu0 0.0
        %313 = vmatpush.msra.mxu0 0.0
        %314 = vmatpush.msra.mxu0 0.0
        %315 = vmatpush.msra.mxu0 0.0
        %316 = vmatpush.msra.mxu0 0.0
        %317 = vmatpush.msra.mxu0 %v290
        %318 = vmatpush.msra.mxu0 %v287
        %319 = vmatpush.msra.mxu0 %v284
        %320 = vmatpush.msra.mxu0 %v281
        %321 = vmatmul.f32.gmra.mxu0 %v303
        %v322 = vpop.f32.mrf.mxu0
        %v323 = vadd.f32 %v295, %v322
        %324 = vdwg.mxu0
        %325 = vmatpush.msra.mxu0 0.0
        %326 = vmatpush.msra.mxu0 0.0
        %327 = vmatpush.msra.mxu0 0.0
        %328 = vmatpush.msra.mxu0 0.0
        %329 = vmatpush.msra.mxu0 0.0
        %330 = vmatpush.msra.mxu0 0.0
        %331 = vmatpush.msra.mxu0 0.0
        %332 = vmatpush.msra.mxu0 0.0
        %333 = vmatpush.msra.mxu0 0.0
        %334 = vmatpush.msra.mxu0 0.0
        %335 = vmatpush.msra.mxu0 0.0
        %336 = vmatpush.msra.mxu0 0.0
        %337 = vmatpush.msra.mxu0 %v291
        %338 = vmatpush.msra.mxu0 %v288
        %339 = vmatpush.msra.mxu0 %v285
        %340 = vmatpush.msra.mxu0 %v282
        %341 = vmatmul.f32.gmra.mxu0 %v303
        %v342 = vpop.f32.mrf.mxu0
        %v343 = vadd.f32 %v296, %v342
        %344 = vdwg.mxu0
        %345 = vmatpush.msra.mxu0 0.0
        %346 = vmatpush.msra.mxu0 0.0
        %347 = vmatpush.msra.mxu0 0.0
        %348 = vmatpush.msra.mxu0 0.0
        %349 = vmatpush.msra.mxu0 0.0
        %350 = vmatpush.msra.mxu0 0.0
        %351 = vmatpush.msra.mxu0 0.0
        %352 = vmatpush.msra.mxu0 0.0
        %353 = vmatpush.msra.mxu0 0.0
        %354 = vmatpush.msra.mxu0 0.0
        %355 = vmatpush.msra.mxu0 0.0
        %356 = vmatpush.msra.mxu0 0.0
        %357 = vmatpush.msra.mxu0 %v292
        %358 = vmatpush.msra.mxu0 %v289
        %359 = vmatpush.msra.mxu0 %v286
        %360 = vmatpush.msra.mxu0 %v283
        %361 = vmatmul.f32.gmra.mxu0 %v303
        %v362 = vpop.f32.mrf.mxu0
        %v363 = vadd.f32 %v297, %v362
        %364 = vdwg.mxu0
        %v365 = vrot.slane %v343, 4
        %v366 = vmax.f32 %v343, %v365
        %v367 = vrot.slane %v366, 2
        %v368 = vmax.f32 %v366, %v367
        %v369 = vrot.slane %v368, 1
        %v370 = vmax.f32 %v368, %v369
        %v371 = vsub.f32 %v343, %v370
        %v372 = vmul.f32 %v371, 1.442695
        %v373 = vpow.pop %v372
        %v374 = vrot.slane %v373, 4
        %v375 = vadd.f32 %v373, %v374
        %v376 = vrot.slane %v375, 2
        %v377 = vadd.f32 %v375, %v376
        %v378 = vrot.slane %v377, 1
        %v379 = vadd.f32 %v377, %v378
        %v380 = vrcp.pop %v379
        %v381 = vmul.f32 %v379, %v380
        %v382 = vsub.f32 1.0, %v381
        %v383 = vmul.f32 %v380, %v382
        %v384 = vadd.f32 %v380, %v383
        %vm385 = vweird.f32 %v379
        %vm386 = vweird.f32 %v380
        %vm387 = vmor %vm385, %vm386
        %v388 = vsel %vm387, %v380, %v384
        %v389 = vand.u32 2147483647, %v379
        %vm390 = vcmp.eq.f32.partialorder %v389, 8.507059e+37
        %v391 = vand.u32 %v379, 2147483648
        %v392 = vor.u32 1.1754944e-38, %v391
        %v393 = vsel %vm390, %v392, %v388
        %v394 = vmul.f32 %v373, %v393
        %395 = vmax.xlane.f32.xlu0 %v323
        %v396 = vpop.xlane.xlu0 %395
        %v397 = vsub.f32 %v323, %v396
        %v398 = vmul.f32 %v397, 1.442695
        %v399 = vpow.pop %v398
        %400 = vadd.xlane.f32.xlu0 %v399
        %v401 = vpop.xlane.xlu0 %400
        %v402 = vrcp.pop %v401
        %v403 = vmul.f32 %v401, %v402
        %v404 = vsub.f32 1.0, %v403
        %v405 = vmul.f32 %v402, %v404
        %v406 = vadd.f32 %v402, %v405
        %vm407 = vweird.f32 %v401
        %vm408 = vweird.f32 %v402
        %vm409 = vmor %vm407, %vm408
        %v410 = vsel %vm409, %v402, %v406
        %v411 = vand.u32 2147483647, %v401
        %vm412 = vcmp.eq.f32.partialorder %v411, 8.507059e+37
        %v413 = vand.u32 %v401, 2147483648
        %v414 = vor.u32 1.1754944e-38, %v413
        %v415 = vsel %vm412, %v414, %v410
        %v416 = vmul.f32 %v399, %v415
        %417 = vxpose.xlu0.b32.start [1/16] %v394, 128
        %418 = vxpose.xlu0.b32.cont [2/16] 0.0, 128
        %419 = vxpose.xlu0.b32.cont [3/16] 0.0, 128
        %420 = vxpose.xlu0.b32.cont [4/16] 0.0, 128
        %421 = vxpose.xlu0.b32.cont [5/16] 0.0, 128
        %422 = vxpose.xlu0.b32.cont [6/16] 0.0, 128
        %423 = vxpose.xlu0.b32.cont [7/16] 0.0, 128
        %424 = vxpose.xlu0.b32.cont [8/16] 0.0, 128
        %425 = vxpose.xlu0.b32.cont [9/16] 0.0, 128
        %426 = vxpose.xlu0.b32.cont [10/16] 0.0, 128
        %427 = vxpose.xlu0.b32.cont [11/16] 0.0, 128
        %428 = vxpose.xlu0.b32.cont [12/16] 0.0, 128
        %429 = vxpose.xlu0.b32.cont [13/16] 0.0, 128
        %430 = vxpose.xlu0.b32.cont [14/16] 0.0, 128
        %431 = vxpose.xlu0.b32.cont [15/16] 0.0, 128
        %432 = vxpose.xlu0.b32.end [16/16] 0.0, 128
        %v433 = vpop.trf.xlu0
        %v434 = vpop.trf.xlu0
        %v435 = vpop.trf.xlu0
        %v436 = vpop.trf.xlu0
        %v437 = vpop.trf.xlu0
        %v438 = vpop.trf.xlu0
        %v439 = vpop.trf.xlu0
        %v440 = vpop.trf.xlu0
        %v441 = vpop.trf.xlu0
        %v442 = vpop.trf.xlu0
        %v443 = vpop.trf.xlu0
        %v444 = vpop.trf.xlu0
        %v445 = vpop.trf.xlu0
        %v446 = vpop.trf.xlu0
        %v447 = vpop.trf.xlu0
        %v448 = vpop.trf.xlu0
        %vm449 = vcmask 64512
        %v451 = vsel %vm449, %v433, 0
        %v454 = vsel %vm449, %v434, 0
        %v457 = vsel %vm449, %v435, 0
        %v460 = vsel %vm449, %v436, 0
        %v463 = vsel %vm449, %v437, 0
        %v466 = vsel %vm449, %v438, 0
        %v469 = vsel %vm449, %v439, 0
        %v472 = vsel %vm449, %v440, 0
        %v475 = vsel %vm449, %v441, 0
        %v478 = vsel %vm449, %v442, 0
        %v481 = vsel %vm449, %v443, 0
        %v484 = vsel %vm449, %v444, 0
        %v487 = vsel %vm449, %v445, 0
        %v490 = vsel %vm449, %v446, 0
        %v493 = vsel %vm449, %v447, 0
        %v496 = vsel %vm449, %v448, 0
        %498 = vmatpush.msra.mxu0 0.0
        %499 = vmatpush.msra.mxu0 0.0
        %500 = vmatpush.msra.mxu0 0.0
        %501 = vmatpush.msra.mxu0 0.0
        %502 = vmatpush.msra.mxu0 0.0
        %503 = vmatpush.msra.mxu0 0.0
        %504 = vmatpush.msra.mxu0 0.0
        %505 = vmatpush.msra.mxu0 0.0
        %506 = vmatpush.msra.mxu0 0.0
        %507 = vmatpush.msra.mxu0 0.0
        %508 = vmatpush.msra.mxu0 0.0
        %509 = vmatpush.msra.mxu0 0.0
        %510 = vmatpush.msra.mxu0 0.0
        %511 = vmatpush.msra.mxu0 0.0
        %512 = vmatpush.msra.mxu0 0.0
        %513 = vmatpush.msra.mxu0 %v363
        %514 = vmatmul.f32.gmra.mxu0 %v451
        %v515 = vpop.f32.mrf.mxu0
        %v516 = vadd.f32 0.0, %v515
        %517 = vmatmul.f32.gmra.mxu0 %v454
        %v518 = vpop.f32.mrf.mxu0
        %v519 = vadd.f32 0.0, %v518
        %520 = vmatmul.f32.gmra.mxu0 %v457
        %v521 = vpop.f32.mrf.mxu0
        %v522 = vadd.f32 0.0, %v521
        %523 = vmatmul.f32.gmra.mxu0 %v460
        %v524 = vpop.f32.mrf.mxu0
        %v525 = vadd.f32 0.0, %v524
        %526 = vmatmul.f32.gmra.mxu0 %v463
        %v527 = vpop.f32.mrf.mxu0
        %v528 = vadd.f32 0.0, %v527
        %529 = vmatmul.f32.gmra.mxu0 %v466
        %v530 = vpop.f32.mrf.mxu0
        %v531 = vadd.f32 0.0, %v530
        %532 = vmatmul.f32.gmra.mxu0 %v469
        %v533 = vpop.f32.mrf.mxu0
        %v534 = vadd.f32 0.0, %v533
        %535 = vmatmul.f32.gmra.mxu0 %v472
        %v536 = vpop.f32.mrf.mxu0
        %v537 = vadd.f32 0.0, %v536
        %538 = vmatmul.f32.gmra.mxu0 %v475
        %v539 = vpop.f32.mrf.mxu0
        %v540 = vadd.f32 0.0, %v539
        %541 = vmatmul.f32.gmra.mxu0 %v478
        %v542 = vpop.f32.mrf.mxu0
        %v543 = vadd.f32 0.0, %v542
        %544 = vmatmul.f32.gmra.mxu0 %v481
        %v545 = vpop.f32.mrf.mxu0
        %v546 = vadd.f32 0.0, %v545
        %547 = vmatmul.f32.gmra.mxu0 %v484
        %v548 = vpop.f32.mrf.mxu0
        %v549 = vadd.f32 0.0, %v548
        %550 = vmatmul.f32.gmra.mxu0 %v487
        %v551 = vpop.f32.mrf.mxu0
        %v552 = vadd.f32 0.0, %v551
        %553 = vmatmul.f32.gmra.mxu0 %v490
        %v554 = vpop.f32.mrf.mxu0
        %v555 = vadd.f32 0.0, %v554
        %556 = vmatmul.f32.gmra.mxu0 %v493
        %v557 = vpop.f32.mrf.mxu0
        %v558 = vadd.f32 0.0, %v557
        %559 = vmatmul.f32.gmra.mxu0 %v496
        %v560 = vpop.f32.mrf.mxu0
        %v561 = vadd.f32 0.0, %v560
        %562 = vdwg.mxu0
        %563 = vmatpush.msra.mxu0 %v561
        %564 = vmatpush.msra.mxu0 %v558
        %565 = vmatpush.msra.mxu0 %v555
        %566 = vmatpush.msra.mxu0 %v552
        %567 = vmatpush.msra.mxu0 %v549
        %568 = vmatpush.msra.mxu0 %v546
        %569 = vmatpush.msra.mxu0 %v543
        %570 = vmatpush.msra.mxu0 %v540
        %571 = vmatpush.msra.mxu0 %v537
        %572 = vmatpush.msra.mxu0 %v534
        %573 = vmatpush.msra.mxu0 %v531
        %574 = vmatpush.msra.mxu0 %v528
        %575 = vmatpush.msra.mxu0 %v525
        %576 = vmatpush.msra.mxu0 %v522
        %577 = vmatpush.msra.mxu0 %v519
        %578 = vmatpush.msra.mxu0 %v516
        %579 = vmatmul.f32.gmra.mxu0 %v416
        %v580 = vpop.f32.mrf.mxu0
        %v581 = vadd.f32 0.0, %v580
        %582 = vdwg.mxu0
        %583 = vst [vmem:[%s279] sm:$0xff] %v581
        %s584 = sand.u32 %s123, 1
        %s585 = scalar_lea.sflag [#allocation4], %s584
        %s586 = sand.u32 %s123, 1
        %s587 = smul.addr %s586, 8
        %s588 = scalar_lea.vmem [#allocation8], %s587
        // Predicated region
        $region45: #{tpu_custom_call.1} parent=31 // pred_check
          %p589 = pneg %p133
        $region46: #{tpu_custom_call.1} parent=31 // pred_check_branch
          %591 = sbr.rel (%p589) target = $region48
        $region47: #{tpu_custom_call.1} parent=31 // pred_region
          %593 = vsyncadd %s585, 0
          %s594 = smul.addr %s28, 2
          %s595 = sadd.s32 %s27, %s594
          %s596 = smul.addr %s595, 8
          %s597 = scalar_lea.hbm %s3, %s596
          %s599 = sshll.u32 %s588, 4
          %s600 = int_to_ptr.vmem [resolvable:$true] %s599
          %s601 = sshll.u32 %s597, 4
          %s602 = int_to_ptr.hbm [resolvable:$true] %s601
          %604 = dma.vmem_to_hbm [thread:$0]  %s600, 128, %s602, %s585
        $region48: #{tpu_custom_call.1} parent=31 // pred_fallthru
          _
      $region32: #{tpu_custom_call.1} parent=5 // pred_fallthru
        _
      %p605 = scmp.le.s32.totalorder 2, %s18
      // Predicated region
      $region49: #{tpu_custom_call.1} parent=5 // pred_check
        %p606 = pneg %p605
      $region50: #{tpu_custom_call.1} parent=5 // pred_check_branch
        %608 = sbr.rel (%p606) target = $region52
      $region51: #{tpu_custom_call.1} parent=5 // pred_region
        %s609 = ssub.s32 %s18, 2
        // Predicated region
        $region53: #{tpu_custom_call.1} parent=51 // pred_check
          %p610 = pneg %p139
        $region54: #{tpu_custom_call.1} parent=51 // pred_check_branch
          %612 = sbr.rel (%p610) target = $region56
        $region55: #{tpu_custom_call.1} parent=51 // pred_region
          %s613 = sand.u32 %s124, 1
          %s614 = scalar_lea.sflag [#allocation4], %s613
          %s615 = sand.u32 %s124, 1
          %s616 = smul.addr %s615, 8
          %s617 = scalar_lea.vmem [#allocation8], %s616
          %619 = dma.done %s614, 128
        $region56: #{tpu_custom_call.1} parent=51 // pred_fallthru
          _
      $region52: #{tpu_custom_call.1} parent=5 // pred_fallthru
        _
    $region6: #{tpu_custom_call.1} parent=1 // loop_footer
      %s22 = sadd.s32 1, %s18
    $region7: #{tpu_custom_call.1} parent=1 // loop_footer_branch
      %17 = sbr.rel target = $region3
    $region8: #{tpu_custom_call.1} parent=1 // loop_exit
      _
    %620 = vsyncpa [#allocation3], 1
    %s621 = scalar_lea.sflag [#allocation3], 1
    %622 = vsyncpa %s621, 1
    %623 = vsyncpa [#allocation6], 1
    %s624 = scalar_lea.sflag [#allocation6], 1
    %625 = vsyncpa %s624, 1
    %626 = vsyncpa [#allocation4], 1
    %s627 = scalar_lea.sflag [#allocation4], 1
    %628 = vsyncpa %s627, 1

</llo_original>
